<compile_context>
chip_gen: v7x
topology: tpu7x:2x2x1
jax: 0.10.0
libtpu: 0.0.40
codegen_flags: <defaults>
</compile_context>

<pallas_src>
import math

import jax
import jax.numpy as jnp
from jax.experimental import pallas as pl
from jax.experimental.pallas import tpu as pltpu


def gru_gate_kernel(x_ref, y_ref, wy_ref, ux_ref, ug_ref, nbg_ref, o_ref):
    D = ug_ref.shape[0]
    x = x_ref[...]                      # (tm, D) in compute dtype (bf16/f32)
    y = y_ref[...]
    xf = x.astype(jnp.float32)          # f32 copy for gating / blend math

    # Fused y-side GEMM: y @ [Wr | Wz | Wg] -> (tm, 3D), f32 accumulation.
    yw = jnp.dot(y, wy_ref[...], preferred_element_type=jnp.float32)
    # Fused x-side GEMM: x @ [Ur | Uz] -> (tm, 2D), f32 accumulation.
    xu = jnp.dot(x, ux_ref[...], preferred_element_type=jnp.float32)

    # r = sigmoid(Wr y + Ur x)
    r = jax.nn.sigmoid(yw[:, 0:D] + xu[:, 0:D])
    # z = sigmoid(Wz y + Uz x - bg)   (bias pre-negated in the wrapper)
    z = jax.nn.sigmoid(yw[:, D:2 * D] + xu[:, D:2 * D] + nbg_ref[...])

    # h = tanh(Wg y + Ug (r * x))
    rx = (r * xf).astype(ug_ref.dtype)
    h = jnp.tanh(yw[:, 2 * D:3 * D]
                 + jnp.dot(rx, ug_ref[...], preferred_element_type=jnp.float32))

    # out = (1 - z) * x + z * h
    o_ref[...] = ((1.0 - z) * xf + z * h).astype(o_ref.dtype)


def gru_gate(x, y, params, *, tm=256, compute_dtype=jnp.bfloat16):
    """x, y: [B, S, D] float32. params: dict of (D, D) weights + (D,) bg.

    Weights are stored as [D_in, D_out] (the transpose of PyTorch's
    nn.Linear.weight), so the kernel computes `y @ W` directly on the MXU.
    """
    B, S, D = x.shape
    M = B * S
    cd = jnp.dtype(compute_dtype)

    # Row-tile granularity: 16 sublanes for bf16 packing, 8 for f32.
    row_mult = 16 if cd == jnp.dtype(jnp.bfloat16) else 8
    tm = max(row_mult, (int(tm) // row_mult) * row_mult)
    tm = min(tm, pl.cdiv(M, row_mult) * row_mult)   # don't over-pad tiny M
    Mp = pl.cdiv(M, tm) * tm                        # padded row count

    x2 = x.reshape(M, D).astype(cd)
    y2 = y.reshape(M, D).astype(cd)
    if Mp != M:
        x2 = jnp.pad(x2, ((0, Mp - M), (0, 0)))
        y2 = jnp.pad(y2, ((0, Mp - M), (0, 0)))

    # Fused, lane-dense weight slabs in the compute dtype.
    wy = jnp.concatenate(
        [params["Wr"], params["Wz"], params["Wg"]], axis=1).astype(cd)   # (D, 3D)
    ux = jnp.concatenate(
        [params["Ur"], params["Uz"]], axis=1).astype(cd)                 # (D, 2D)
    ug = params["Ug"].astype(cd)                                         # (D, D)
    neg_bg = (-params["bg"]).reshape(1, D).astype(jnp.float32)           # (1, D)

    row_spec = pl.BlockSpec((tm, D), lambda i: (i, 0))

    out = pl.pallas_call(
        gru_gate_kernel,
        out_shape=jax.ShapeDtypeStruct((Mp, D), x.dtype),
        grid_spec=pltpu.PrefetchScalarGridSpec(
            num_scalar_prefetch=0,
            grid=(Mp // tm,),
            in_specs=[row_spec,                                       # x
                      row_spec,                                       # y
                      pl.BlockSpec((D, 3 * D), lambda i: (0, 0)),     # [Wr|Wz|Wg]
                      pl.BlockSpec((D, 2 * D), lambda i: (0, 0)),     # [Ur|Uz]
                      pl.BlockSpec((D, D), lambda i: (0, 0)),         # Ug
                      pl.BlockSpec((1, D), lambda i: (0, 0))],        # -bg
            out_specs=row_spec,
        ),
        compiler_params=pltpu.CompilerParams(
            dimension_semantics=("parallel",),
            vmem_limit_bytes=48 * 1024 * 1024),
    )(x2, y2, wy, ux, ug, neg_bg)

    return out[:M].reshape(B, S, D)


def xavier_uniform(key, d):
    # PyTorch xavier_uniform_ for a (d, d) matrix: U(-a, a), a = sqrt(6/(d+d))
    a = math.sqrt(6.0 / (d + d))
    return jax.random.uniform(key, (d, d), jnp.float32, minval=-a, maxval=a)


def init_params(key, d, bg=0.0):
    keys = jax.random.split(key, 6)
    names = ["Wr", "Ur", "Wz", "Uz", "Wg", "Ug"]
    # Stored pre-transposed: W_kernel = W_torch.T, so y @ W_kernel == y @ W_torch.T
    params = {n: xavier_uniform(k, d).T for n, k in zip(names, keys)}
    params["bg"] = jnp.full((d,), bg, jnp.float32)
    return params


def gru_gate_ref(x, y, p):
    """Plain-JAX reference matching the PyTorch forward."""
    r = jax.nn.sigmoid(y @ p["Wr"] + x @ p["Ur"])
    z = jax.nn.sigmoid(y @ p["Wz"] + x @ p["Uz"] - p["bg"])
    h = jnp.tanh(y @ p["Wg"] + (r * x) @ p["Ug"])
    return (1.0 - z) * x + z * h


if __name__ == "__main__":
    B, S, D = 2, 8, 32
    key = jax.random.PRNGKey(0)
    kx, ky, kp = jax.random.split(key, 3)
    x = jax.random.normal(kx, (B, S, D), jnp.float32)
    y = jax.random.normal(ky, (B, S, D), jnp.float32)
    params = init_params(kp, D, bg=0.5)

    ref = gru_gate_ref(x, y, params)

    # Exact-math path (f32 compute) — tight tolerance.
    out_f32 = gru_gate(x, y, params, compute_dtype=jnp.float32)
    jax.block_until_ready(out_f32)
    assert jnp.allclose(out_f32, ref, atol=1e-5, rtol=1e-5), "f32 mismatch vs reference"

    # Performance path (bf16 inputs/weights, f32 accumulation) — bf16 tolerance.
    out_bf16 = gru_gate(x, y, params, compute_dtype=jnp.bfloat16)
    jax.block_until_ready(out_bf16)
    assert jnp.allclose(out_bf16, ref, atol=5e-2, rtol=5e-2), "bf16 mismatch vs reference"

    print("KERNEL_OK")
</pallas_src>

<mosaic_0001>
module attributes {stable_mosaic.version = 11 : i64} {
  func.func @gru_gate_kernel(%arg0: i32, %arg1: memref<16x32xf32, #tpu.memory_space<vmem>>, %arg2: memref<16x32xf32, #tpu.memory_space<vmem>>, %arg3: memref<32x96xf32, #tpu.memory_space<vmem>>, %arg4: memref<32x64xf32, #tpu.memory_space<vmem>>, %arg5: memref<32x32xf32, #tpu.memory_space<vmem>>, %arg6: memref<1x32xf32, #tpu.memory_space<vmem>>, %arg7: memref<16x32xf32, #tpu.memory_space<vmem>>) attributes {dimension_semantics = [#tpu.dimension_semantics<parallel>], iteration_bounds = array<i64: 1>, scalar_prefetch = 0 : i64, scratch_operands = 0 : i64, tpu.core_type = #tpu.core_type<tc>, window_params = [{transform_indices = @transform_0, window_bounds = array<i64: 16, 32>}, {transform_indices = @transform_1, window_bounds = array<i64: 16, 32>}, {pipeline_mode = #tpu.pipeline_mode<synchronous>, transform_indices = @transform_2, window_bounds = array<i64: 32, 96>}, {pipeline_mode = #tpu.pipeline_mode<synchronous>, transform_indices = @transform_3, window_bounds = array<i64: 32, 64>}, {pipeline_mode = #tpu.pipeline_mode<synchronous>, transform_indices = @transform_4, window_bounds = array<i64: 32, 32>}, {pipeline_mode = #tpu.pipeline_mode<synchronous>, transform_indices = @transform_5, window_bounds = array<i64: 1, 32>}, {transform_indices = @transform_6, window_bounds = array<i64: 16, 32>}]} {
    %c0 = arith.constant 0 : index
    %c0_0 = arith.constant 0 : index
    %0 = vector.load %arg1[%c0, %c0_0] : memref<16x32xf32, #tpu.memory_space<vmem>>, vector<16x32xf32>
    %c0_1 = arith.constant 0 : index
    %c0_2 = arith.constant 0 : index
    %1 = vector.load %arg2[%c0_1, %c0_2] : memref<16x32xf32, #tpu.memory_space<vmem>>, vector<16x32xf32>
    %c0_3 = arith.constant 0 : index
    %c0_4 = arith.constant 0 : index
    %2 = vector.load %arg3[%c0_3, %c0_4] : memref<32x96xf32, #tpu.memory_space<vmem>>, vector<32x96xf32>
    %cst = arith.constant dense<0.000000e+00> : vector<16x96xf32>
    %3 = tpu.matmul %1, %2, %cst {dimension_numbers = #tpu.dot_dimension_numbers<[1], [0], [0], [1], [0, 0, 1, 1], [], []>} : vector<16x32xf32>, vector<32x96xf32>, vector<16x96xf32> -> vector<16x96xf32>
    %c0_5 = arith.constant 0 : index
    %c0_6 = arith.constant 0 : index
    %4 = vector.load %arg4[%c0_5, %c0_6] : memref<32x64xf32, #tpu.memory_space<vmem>>, vector<32x64xf32>
    %cst_7 = arith.constant dense<0.000000e+00> : vector<16x64xf32>
    %5 = tpu.matmul %0, %4, %cst_7 {dimension_numbers = #tpu.dot_dimension_numbers<[1], [0], [0], [1], [0, 0, 1, 1], [], []>} : vector<16x32xf32>, vector<32x64xf32>, vector<16x64xf32> -> vector<16x64xf32>
    %6 = vector.extract_strided_slice %3 {offsets = [0, 0], sizes = [16, 32], strides = [1, 1]} : vector<16x96xf32> to vector<16x32xf32>
    %7 = vector.extract_strided_slice %5 {offsets = [0, 0], sizes = [16, 32], strides = [1, 1]} : vector<16x64xf32> to vector<16x32xf32>
    %8 = arith.addf %6, %7 : vector<16x32xf32>
    %9 = arith.negf %8 : vector<16x32xf32>
    %10 = math.exp %9 : vector<16x32xf32>
    %cst_8 = arith.constant 1.000000e+00 : f32
    %11 = vector.broadcast %cst_8 : f32 to vector<16x32xf32>
    %12 = arith.addf %11, %10 : vector<16x32xf32>
    %13 = arith.divf %11, %12 : vector<16x32xf32>
    %14 = vector.extract_strided_slice %3 {offsets = [0, 32], sizes = [16, 32], strides = [1, 1]} : vector<16x96xf32> to vector<16x32xf32>
    %15 = vector.extract_strided_slice %5 {offsets = [0, 32], sizes = [16, 32], strides = [1, 1]} : vector<16x64xf32> to vector<16x32xf32>
    %16 = arith.addf %14, %15 : vector<16x32xf32>
    %c0_9 = arith.constant 0 : index
    %c0_10 = arith.constant 0 : index
    %17 = vector.load %arg6[%c0_9, %c0_10] : memref<1x32xf32, #tpu.memory_space<vmem>>, vector<1x32xf32>
    %18 = vector.broadcast %17 : vector<1x32xf32> to vector<16x32xf32>
    %19 = arith.addf %16, %18 : vector<16x32xf32>
    %20 = arith.negf %19 : vector<16x32xf32>
    %21 = math.exp %20 : vector<16x32xf32>
    %cst_11 = arith.constant 1.000000e+00 : f32
    %22 = vector.broadcast %cst_11 : f32 to vector<16x32xf32>
    %23 = arith.addf %22, %21 : vector<16x32xf32>
    %24 = arith.divf %22, %23 : vector<16x32xf32>
    %25 = arith.mulf %13, %0 : vector<16x32xf32>
    %26 = vector.extract_strided_slice %3 {offsets = [0, 64], sizes = [16, 32], strides = [1, 1]} : vector<16x96xf32> to vector<16x32xf32>
    %c0_12 = arith.constant 0 : index
    %c0_13 = arith.constant 0 : index
    %27 = vector.load %arg5[%c0_12, %c0_13] : memref<32x32xf32, #tpu.memory_space<vmem>>, vector<32x32xf32>
    %cst_14 = arith.constant dense<0.000000e+00> : vector<16x32xf32>
    %28 = tpu.matmul %25, %27, %cst_14 {dimension_numbers = #tpu.dot_dimension_numbers<[1], [0], [0], [1], [0, 0, 1, 1], [], []>} : vector<16x32xf32>, vector<32x32xf32>, vector<16x32xf32> -> vector<16x32xf32>
    %29 = arith.addf %26, %28 : vector<16x32xf32>
    %30 = math.tanh %29 : vector<16x32xf32>
    %cst_15 = arith.constant 1.000000e+00 : f32
    %31 = vector.broadcast %cst_15 : f32 to vector<16x32xf32>
    %32 = arith.subf %31, %24 : vector<16x32xf32>
    %33 = arith.mulf %32, %0 : vector<16x32xf32>
    %34 = arith.mulf %24, %30 : vector<16x32xf32>
    %35 = arith.addf %33, %34 : vector<16x32xf32>
    %c0_16 = arith.constant 0 : index
    %c0_17 = arith.constant 0 : index
    %36 = vector.load %arg7[%c0_16, %c0_17] : memref<16x32xf32, #tpu.memory_space<vmem>>, vector<16x32xf32>
    tpu.vector_store %arg7[%c0_16, %c0_17], %35 {strides = array<i32>} : memref<16x32xf32, #tpu.memory_space<vmem>>, vector<16x32xf32>,
    return
  }
  func.func @transform_0(%arg0: i32) -> (i32, i32) {
    %c0_i32 = arith.constant 0 : i32
    %c0_i32_0 = arith.constant 0 : i32
    return %arg0, %c0_i32 : i32, i32
  }
  func.func @transform_1(%arg0: i32) -> (i32, i32) {
    %c0_i32 = arith.constant 0 : i32
    %c0_i32_0 = arith.constant 0 : i32
    return %arg0, %c0_i32 : i32, i32
  }
  func.func @transform_2(%arg0: i32) -> (i32, i32) {
    %c0_i32 = arith.constant 0 : i32
    %c0_i32_0 = arith.constant 0 : i32
    %c0_i32_1 = arith.constant 0 : i32
    return %c0_i32, %c0_i32_0 : i32, i32
  }
  func.func @transform_3(%arg0: i32) -> (i32, i32) {
    %c0_i32 = arith.constant 0 : i32
    %c0_i32_0 = arith.constant 0 : i32
    %c0_i32_1 = arith.constant 0 : i32
    return %c0_i32, %c0_i32_0 : i32, i32
  }
  func.func @transform_4(%arg0: i32) -> (i32, i32) {
    %c0_i32 = arith.constant 0 : i32
    %c0_i32_0 = arith.constant 0 : i32
    %c0_i32_1 = arith.constant 0 : i32
    return %c0_i32, %c0_i32_0 : i32, i32
  }
  func.func @transform_5(%arg0: i32) -> (i32, i32) {
    %c0_i32 = arith.constant 0 : i32
    %c0_i32_0 = arith.constant 0 : i32
    %c0_i32_1 = arith.constant 0 : i32
    return %c0_i32, %c0_i32_0 : i32, i32
  }
  func.func @transform_6(%arg0: i32) -> (i32, i32) {
    %c0_i32 = arith.constant 0 : i32
    %c0_i32_0 = arith.constant 0 : i32
    return %arg0, %c0_i32 : i32, i32
  }
}

</mosaic_0001>

<llo_original>
// kernel: tpu_custom_call.1
$region0: #{tpu_custom_call.1}
  #allocation0 [shape = 'u32[]', space=smem, size = 0x4, offset = 0x4, fixed_abs, tag = 'smem constant byte address 0x4 - core index']
  #allocation1 [shape = 'u32[144,128]{1,0:T(1,128)}', space=vmem, size = 0x12000, scoped, tag = 'internal scratch']
  %s0 = inlined_call_operand.hbm [shape: f32[16,32], index: 0, kind: input, shape index: {}]
  %s1 = inlined_call_operand.hbm [shape: f32[16,32], index: 1, kind: input, shape index: {}]
  %s2 = inlined_call_operand.hbm [shape: f32[32,96], index: 2, kind: input, shape index: {}]
  %s3 = inlined_call_operand.hbm [shape: f32[32,64], index: 3, kind: input, shape index: {}]
  %s4 = inlined_call_operand.hbm [shape: f32[32,32], index: 4, kind: input, shape index: {}]
  %s5 = inlined_call_operand.vmem [shape: f32[1,32], index: 5, kind: input, shape index: {}]
  %s6 = inlined_call_operand.hbm [shape: f32[16,32], index: 6, kind: output, shape index: {}]
  %s7 = sld [smem:[#allocation0]]
  $region54: #{tpu_custom_call.1} parent=0
    _
  %s9 = ssub.s32 1, %s7
  %s10 = scalar_select 0, %s9, %s7
  $region1: #{tpu_custom_call.1} parent=0
    #allocation2 [shape = 'u8[8192]{0}', space=vmem, size = 0x2000, scoped, tag = 'input window, operand 0, single buffered']
    #allocation3 [shape = 's32[1]{0}', space=sflag, size = 0x4, scoped, tag = 'scoped memory for tpu_custom_call.1']
    #allocation4 [shape = 's32[1]{0}', space=sflag, size = 0x4, scoped, tag = 'scoped memory for tpu_custom_call.1']
    #allocation5 [shape = 'u8[8192]{0}', space=vmem, size = 0x2000, scoped, tag = 'input window, operand 1, single buffered']
    #allocation6 [shape = 's32[1]{0}', space=sflag, size = 0x4, scoped, tag = 'scoped memory for tpu_custom_call.1']
    #allocation7 [shape = 'u8[16384]{0}', space=vmem, size = 0x4000, scoped, tag = 'input window, operand 2, single buffered']
    #allocation8 [shape = 'u8[16384]{0}', space=vmem, size = 0x4000, scoped, tag = 'input window, operand 3, single buffered']
    #allocation9 [shape = 's32[1]{0}', space=sflag, size = 0x4, scoped, tag = 'scoped memory for tpu_custom_call.1']
    #allocation10 [shape = 'u8[16384]{0}', space=vmem, size = 0x4000, scoped, tag = 'input window, operand 4, single buffered']
    #allocation11 [shape = 'u8[8192]{0}', space=vmem, size = 0x2000, scoped, tag = 'output window, operand 0, single buffered']
    %11 = vsyncpa [#allocation3], 0
    %12 = vsyncpa [#allocation6], 0
    %13 = vsyncpa [#allocation9], 0
    %14 = vsyncpa [#allocation4], 0
    // Predicated region
    $region2: #{tpu_custom_call.1} parent=1 // pred_check
      _
    $region3: #{tpu_custom_call.1} parent=1 // pred_check_branch
      %16 = sbr.rel (0) target = $region5
    $region4: #{tpu_custom_call.1} parent=1 // pred_region
      %s18 = ssub.s32 256, 256
      %19 = vsyncadd [#allocation3], %s18
      %s20 = sshll.u32 [#allocation2], 4
      %s21 = int_to_ptr.vmem [resolvable:$true] %s20
      %26 = dma.hbm_to_vmem [thread:$0]  %s0, 256, %s21, [#allocation3], 128, 128, 8
    $region5: #{tpu_custom_call.1} parent=1 // pred_fallthru
      _
    // Predicated region
    $region6: #{tpu_custom_call.1} parent=1 // pred_check
      _
    $region7: #{tpu_custom_call.1} parent=1 // pred_check_branch
      %28 = sbr.rel (0) target = $region9
    $region8: #{tpu_custom_call.1} parent=1 // pred_region
      %s30 = ssub.s32 256, 256
      %31 = vsyncadd [#allocation6], %s30
      %s32 = sshll.u32 [#allocation5], 4
      %s33 = int_to_ptr.vmem [resolvable:$true] %s32
      %38 = dma.hbm_to_vmem [thread:$0]  %s1, 256, %s33, [#allocation6], 128, 128, 8
    $region9: #{tpu_custom_call.1} parent=1 // pred_fallthru
      _
    // Predicated region
    $region10: #{tpu_custom_call.1} parent=1 // pred_check
      _
    $region11: #{tpu_custom_call.1} parent=1 // pred_check_branch
      %40 = sbr.rel (0) target = $region13
    $region12: #{tpu_custom_call.1} parent=1 // pred_region
      %s42 = ssub.s32 512, 512
      %43 = vsyncadd [#allocation6], %s42
      %s44 = sshll.u32 [#allocation7], 4
      %s45 = int_to_ptr.vmem [resolvable:$true] %s44
      %50 = dma.hbm_to_vmem [thread:$0]  %s2, 512, %s45, [#allocation6], 128, 128, 8
    $region13: #{tpu_custom_call.1} parent=1 // pred_fallthru
      _
    // Predicated region
    $region14: #{tpu_custom_call.1} parent=1 // pred_check
      _
    $region15: #{tpu_custom_call.1} parent=1 // pred_check_branch
      %52 = sbr.rel (0) target = $region17
    $region16: #{tpu_custom_call.1} parent=1 // pred_region
      %s54 = ssub.s32 512, 512
      %55 = vsyncadd [#allocation9], %s54
      %s56 = sshll.u32 [#allocation8], 4
      %s57 = int_to_ptr.vmem [resolvable:$true] %s56
      %62 = dma.hbm_to_vmem [thread:$0]  %s3, 512, %s57, [#allocation9], 128, 128, 8
    $region17: #{tpu_custom_call.1} parent=1 // pred_fallthru
      _
    // Predicated region
    $region18: #{tpu_custom_call.1} parent=1 // pred_check
      _
    $region19: #{tpu_custom_call.1} parent=1 // pred_check_branch
      %64 = sbr.rel (0) target = $region21
    $region20: #{tpu_custom_call.1} parent=1 // pred_region
      %s66 = ssub.s32 512, 512
      %67 = vsyncadd [#allocation9], %s66
      %s68 = sshll.u32 [#allocation10], 4
      %s69 = int_to_ptr.vmem [resolvable:$true] %s68
      %74 = dma.hbm_to_vmem [thread:$0]  %s4, 512, %s69, [#allocation9], 128, 128, 8
    $region21: #{tpu_custom_call.1} parent=1 // pred_fallthru
      _
    // Predicated region
    $region22: #{tpu_custom_call.1} parent=1 // pred_check
      _
    $region23: #{tpu_custom_call.1} parent=1 // pred_check_branch
      %76 = sbr.rel (0) target = $region25
    $region24: #{tpu_custom_call.1} parent=1 // pred_region
      _
    $region25: #{tpu_custom_call.1} parent=1 // pred_fallthru
      _
    // Predicated region
    $region26: #{tpu_custom_call.1} parent=1 // pred_check
      _
    $region27: #{tpu_custom_call.1} parent=1 // pred_check_branch
      %78 = sbr.rel (0) target = $region29
    $region28: #{tpu_custom_call.1} parent=1 // pred_region
      %79 = dma.done [#allocation3], 256
    $region29: #{tpu_custom_call.1} parent=1 // pred_fallthru
      _
    // Predicated region
    $region30: #{tpu_custom_call.1} parent=1 // pred_check
      _
    $region31: #{tpu_custom_call.1} parent=1 // pred_check_branch
      %81 = sbr.rel (0) target = $region33
    $region32: #{tpu_custom_call.1} parent=1 // pred_region
      %82 = dma.done [#allocation6], 256
    $region33: #{tpu_custom_call.1} parent=1 // pred_fallthru
      _
    // Predicated region
    $region34: #{tpu_custom_call.1} parent=1 // pred_check
      _
    $region35: #{tpu_custom_call.1} parent=1 // pred_check_branch
      %84 = sbr.rel (0) target = $region37
    $region36: #{tpu_custom_call.1} parent=1 // pred_region
      %85 = dma.done [#allocation6], 512
    $region37: #{tpu_custom_call.1} parent=1 // pred_fallthru
      _
    // Predicated region
    $region38: #{tpu_custom_call.1} parent=1 // pred_check
      _
    $region39: #{tpu_custom_call.1} parent=1 // pred_check_branch
      %87 = sbr.rel (0) target = $region41
    $region40: #{tpu_custom_call.1} parent=1 // pred_region
      %88 = dma.done [#allocation9], 512
    $region41: #{tpu_custom_call.1} parent=1 // pred_fallthru
      _
    // Predicated region
    $region42: #{tpu_custom_call.1} parent=1 // pred_check
      _
    $region43: #{tpu_custom_call.1} parent=1 // pred_check_branch
      %90 = sbr.rel (0) target = $region45
    $region44: #{tpu_custom_call.1} parent=1 // pred_region
      %91 = dma.done [#allocation9], 512
    $region45: #{tpu_custom_call.1} parent=1 // pred_fallthru
      _
    %v92 = vld [vmem:[#allocation2] sm:$0xff]
    %v93 = vld [vmem:[#allocation2 + $0x8] sm:$0xff]
    %v94 = vld [vmem:[#allocation5] sm:$0xff]
    %v95 = vld [vmem:[#allocation5 + $0x8] sm:$0xff]
    %v96 = vld [vmem:[#allocation7] sm:$0xff]
    %v97 = vld [vmem:[#allocation7 + $0x8] sm:$0xff]
    %v98 = vld [vmem:[#allocation7 + $0x10] sm:$0xff]
    %v99 = vld [vmem:[#allocation7 + $0x18] sm:$0xff]
    %vm100 = vcmask 261120
    %v102 = vsel %vm100, %v94, 0
    %v105 = vsel %vm100, %v95, 0
    %107 = vmatprep.subr.mxu0 0.0
    %108 = vmatpush1.msra.mxu0 %v96
    %109 = vmatprep.subr.mxu0 0.0
    %110 = vmatpush1.msra.mxu0 %v97
    %111 = vmatprep.subr.mxu0 0.0
    %112 = vmatpush1.msra.mxu0 %v98
    %113 = vmatprep.subr.mxu0 0.0
    %114 = vmatpush1.msra.mxu0 %v99
    %115 = vmatprep.subr.mxu0 0.0
    %116 = vmatpush1.msra.mxu0 0.0
    %117 = vmatprep.subr.mxu0 0.0
    %118 = vmatpush1.msra.mxu0 0.0
    %119 = vmatprep.subr.mxu0 0.0
    %120 = vmatpush1.msra.mxu0 0.0
    %121 = vmatprep.subr.mxu0 0.0
    %122 = vmatpush1.msra.mxu0 0.0
    %123 = vmatprep.subr.mxu0 0.0
    %124 = vmatpush1.msra.mxu0 0.0
    %125 = vmatprep.subr.mxu0 0.0
    %126 = vmatpush1.msra.mxu0 0.0
    %127 = vmatprep.subr.mxu0 0.0
    %128 = vmatpush1.msra.mxu0 0.0
    %129 = vmatprep.subr.mxu0 0.0
    %130 = vmatpush1.msra.mxu0 0.0
    %131 = vmatprep.subr.mxu0 0.0
    %132 = vmatpush1.msra.mxu0 0.0
    %133 = vmatprep.subr.mxu0 0.0
    %134 = vmatpush1.msra.mxu0 0.0
    %135 = vmatprep.subr.mxu0 0.0
    %136 = vmatpush1.msra.mxu0 0.0
    %137 = vmatprep.subr.mxu0 0.0
    %138 = vmatpush1.msra.mxu0 0.0
    %139 = vmatprep.subr.mxu0 0.0
    %140 = vmatpush1.msra.mxu0 0.0
    %141 = vmatprep.subr.mxu0 0.0
    %142 = vmatpush1.msra.mxu0 0.0
    %143 = vmatprep.subr.mxu0 0.0
    %144 = vmatpush1.msra.mxu0 0.0
    %145 = vmatprep.subr.mxu0 0.0
    %146 = vmatpush1.msra.mxu0 0.0
    %147 = vmatprep.subr.mxu0 0.0
    %148 = vmatpush1.msra.mxu0 0.0
    %149 = vmatprep.subr.mxu0 0.0
    %150 = vmatpush1.msra.mxu0 0.0
    %151 = vmatprep.subr.mxu0 0.0
    %152 = vmatpush1.msra.mxu0 0.0
    %153 = vmatprep.subr.mxu0 0.0
    %154 = vmatpush1.msra.mxu0 0.0
    %155 = vmatprep.subr.mxu0 0.0
    %156 = vmatpush1.msra.mxu0 0.0
    %157 = vmatprep.subr.mxu0 0.0
    %158 = vmatpush1.msra.mxu0 0.0
    %159 = vmatprep.subr.mxu0 0.0
    %160 = vmatpush1.msra.mxu0 0.0
    %161 = vmatprep.subr.mxu0 0.0
    %162 = vmatpush1.msra.mxu0 0.0
    %163 = vmatprep.subr.mxu0 0.0
    %164 = vmatpush1.msra.mxu0 0.0
    %165 = vmatprep.subr.mxu0 0.0
    %166 = vmatpush1.msra.mxu0 0.0
    %167 = vmatprep.subr.mxu0 0.0
    %168 = vmatpush1.msra.mxu0 0.0
    %169 = vmatprep.subr.mxu0 0.0
    %170 = vmatpush1.msra.mxu0 0.0
    %171 = vmatprep.mubr.f32.mxu0 0.0
    %172 = vmatmul.mubr.f32.gmra.mrb[0].mxu0 %v102
    %v173 = vpop.f32.mrb[0].mxu0
    %v174 = vadd.f32 0.0, %v173
    %v175 = vpop.f32.mrb[0].mxu0
    %176 = vmatprep.mubr.f32.mxu0 0.0
    %177 = vmatmul.mubr.f32.gmra.mrb[0].mxu0 %v105
    %v178 = vpop.f32.mrb[0].mxu0
    %v179 = vadd.f32 0.0, %v178
    %v180 = vpop.f32.mrb[0].mxu0
    %181 = vdwg.mxu0
    %v182 = vld [vmem:[#allocation8] sm:$0xff]
    %v183 = vld [vmem:[#allocation8 + $0x8] sm:$0xff]
    %v184 = vld [vmem:[#allocation8 + $0x10] sm:$0xff]
    %v185 = vld [vmem:[#allocation8 + $0x18] sm:$0xff]
    %v187 = vsel %vm100, %v92, 0
    %v190 = vsel %vm100, %v93, 0
    %192 = vmatprep.subr.mxu0 0.0
    %193 = vmatpush1.msra.mxu0 %v182
    %194 = vmatprep.subr.mxu0 0.0
    %195 = vmatpush1.msra.mxu0 %v183
    %196 = vmatprep.subr.mxu0 0.0
    %197 = vmatpush1.msra.mxu0 %v184
    %198 = vmatprep.subr.mxu0 0.0
    %199 = vmatpush1.msra.mxu0 %v185
    %200 = vmatprep.subr.mxu0 0.0
    %201 = vmatpush1.msra.mxu0 0.0
    %202 = vmatprep.subr.mxu0 0.0
    %203 = vmatpush1.msra.mxu0 0.0
    %204 = vmatprep.subr.mxu0 0.0
    %205 = vmatpush1.msra.mxu0 0.0
    %206 = vmatprep.subr.mxu0 0.0
    %207 = vmatpush1.msra.mxu0 0.0
    %208 = vmatprep.subr.mxu0 0.0
    %209 = vmatpush1.msra.mxu0 0.0
    %210 = vmatprep.subr.mxu0 0.0
    %211 = vmatpush1.msra.mxu0 0.0
    %212 = vmatprep.subr.mxu0 0.0
    %213 = vmatpush1.msra.mxu0 0.0
    %214 = vmatprep.subr.mxu0 0.0
    %215 = vmatpush1.msra.mxu0 0.0
    %216 = vmatprep.subr.mxu0 0.0
    %217 = vmatpush1.msra.mxu0 0.0
    %218 = vmatprep.subr.mxu0 0.0
    %219 = vmatpush1.msra.mxu0 0.0
    %220 = vmatprep.subr.mxu0 0.0
    %221 = vmatpush1.msra.mxu0 0.0
    %222 = vmatprep.subr.mxu0 0.0
    %223 = vmatpush1.msra.mxu0 0.0
    %224 = vmatprep.subr.mxu0 0.0
    %225 = vmatpush1.msra.mxu0 0.0
    %226 = vmatprep.subr.mxu0 0.0
    %227 = vmatpush1.msra.mxu0 0.0
    %228 = vmatprep.subr.mxu0 0.0
    %229 = vmatpush1.msra.mxu0 0.0
    %230 = vmatprep.subr.mxu0 0.0
    %231 = vmatpush1.msra.mxu0 0.0
    %232 = vmatprep.subr.mxu0 0.0
    %233 = vmatpush1.msra.mxu0 0.0
    %234 = vmatprep.subr.mxu0 0.0
    %235 = vmatpush1.msra.mxu0 0.0
    %236 = vmatprep.subr.mxu0 0.0
    %237 = vmatpush1.msra.mxu0 0.0
    %238 = vmatprep.subr.mxu0 0.0
    %239 = vmatpush1.msra.mxu0 0.0
    %240 = vmatprep.subr.mxu0 0.0
    %241 = vmatpush1.msra.mxu0 0.0
    %242 = vmatprep.subr.mxu0 0.0
    %243 = vmatpush1.msra.mxu0 0.0
    %244 = vmatprep.subr.mxu0 0.0
    %245 = vmatpush1.msra.mxu0 0.0
    %246 = vmatprep.subr.mxu0 0.0
    %247 = vmatpush1.msra.mxu0 0.0
    %248 = vmatprep.subr.mxu0 0.0
    %249 = vmatpush1.msra.mxu0 0.0
    %250 = vmatprep.subr.mxu0 0.0
    %251 = vmatpush1.msra.mxu0 0.0
    %252 = vmatprep.subr.mxu0 0.0
    %253 = vmatpush1.msra.mxu0 0.0
    %254 = vmatprep.subr.mxu0 0.0
    %255 = vmatpush1.msra.mxu0 0.0
    %256 = vmatprep.mubr.f32.mxu0 0.0
    %257 = vmatmul.mubr.f32.gmra.mrb[0].mxu0 %v187
    %v258 = vpop.f32.mrb[0].mxu0
    %v259 = vadd.f32 0.0, %v258
    %v260 = vpop.f32.mrb[0].mxu0
    %261 = vmatprep.mubr.f32.mxu0 0.0
    %262 = vmatmul.mubr.f32.gmra.mrb[0].mxu0 %v190
    %v263 = vpop.f32.mrb[0].mxu0
    %v264 = vadd.f32 0.0, %v263
    %v265 = vpop.f32.mrb[0].mxu0
    %266 = vdwg.mxu0
    %v267 = vadd.f32 %v174, %v259
    %v268 = vadd.f32 %v179, %v264
    %v269 = vxor.u32 %v267, 2147483648
    %v270 = vxor.u32 %v268, 2147483648
    %v271 = vmul.f32 %v269, 1.442695
    %v272 = vpow.pop %v271
    %v273 = vmul.f32 %v270, 1.442695
    %v274 = vpow.pop %v273
    %v275 = vadd.f32 %v272, 1.0
    %v276 = vadd.f32 %v274, 1.0
    %v277 = vrcp.pop %v275
    %v278 = vmul.f32 1.0, %v277
    %v279 = vrcp.pop %v276
    %v280 = vmul.f32 1.0, %v279
    %v281 = vld [vmem:[%s5] sm:$0x1]
    %v283 = vlaneseq
    %v284 = vshrl.u32 %v283, 7
    %v285 = vsub.s32 0, %v284
    %v286 = vrot.slane %v281, %v285
    %287 = vrot.lane.b32.xlu0 %v286, 32
    %v288 = vpop.permute.xlu0 %287
    %v290 = vadd.f32 %v267, %v288
    %v291 = vadd.f32 %v268, %v288
    %v292 = vxor.u32 %v290, 2147483648
    %v293 = vxor.u32 %v291, 2147483648
    %v294 = vmul.f32 %v292, 1.442695
    %v295 = vpow.pop %v294
    %v296 = vmul.f32 %v293, 1.442695
    %v297 = vpow.pop %v296
    %v298 = vadd.f32 %v295, 1.0
    %v299 = vadd.f32 %v297, 1.0
    %v300 = vrcp.pop %v298
    %v301 = vmul.f32 1.0, %v300
    %v302 = vrcp.pop %v299
    %v303 = vmul.f32 1.0, %v302
    %v304 = vmul.f32 %v278, %v92
    %v305 = vmul.f32 %v280, %v93
    %v306 = vld [vmem:[#allocation10] sm:$0xff]
    %v307 = vld [vmem:[#allocation10 + $0x8] sm:$0xff]
    %v308 = vld [vmem:[#allocation10 + $0x10] sm:$0xff]
    %v309 = vld [vmem:[#allocation10 + $0x18] sm:$0xff]
    %v311 = vsel %vm100, %v304, 0
    %v314 = vsel %vm100, %v305, 0
    %316 = vmatprep.subr.mxu0 0.0
    %317 = vmatpush1.msra.mxu0 %v306
    %318 = vmatprep.subr.mxu0 0.0
    %319 = vmatpush1.msra.mxu0 %v307
    %320 = vmatprep.subr.mxu0 0.0
    %321 = vmatpush1.msra.mxu0 %v308
    %322 = vmatprep.subr.mxu0 0.0
    %323 = vmatpush1.msra.mxu0 %v309
    %324 = vmatprep.subr.mxu0 0.0
    %325 = vmatpush1.msra.mxu0 0.0
    %326 = vmatprep.subr.mxu0 0.0
    %327 = vmatpush1.msra.mxu0 0.0
    %328 = vmatprep.subr.mxu0 0.0
    %329 = vmatpush1.msra.mxu0 0.0
    %330 = vmatprep.subr.mxu0 0.0
    %331 = vmatpush1.msra.mxu0 0.0
    %332 = vmatprep.subr.mxu0 0.0
    %333 = vmatpush1.msra.mxu0 0.0
    %334 = vmatprep.subr.mxu0 0.0
    %335 = vmatpush1.msra.mxu0 0.0
    %336 = vmatprep.subr.mxu0 0.0
    %337 = vmatpush1.msra.mxu0 0.0
    %338 = vmatprep.subr.mxu0 0.0
    %339 = vmatpush1.msra.mxu0 0.0
    %340 = vmatprep.subr.mxu0 0.0
    %341 = vmatpush1.msra.mxu0 0.0
    %342 = vmatprep.subr.mxu0 0.0
    %343 = vmatpush1.msra.mxu0 0.0
    %344 = vmatprep.subr.mxu0 0.0
    %345 = vmatpush1.msra.mxu0 0.0
    %346 = vmatprep.subr.mxu0 0.0
    %347 = vmatpush1.msra.mxu0 0.0
    %348 = vmatprep.subr.mxu0 0.0
    %349 = vmatpush1.msra.mxu0 0.0
    %350 = vmatprep.subr.mxu0 0.0
    %351 = vmatpush1.msra.mxu0 0.0
    %352 = vmatprep.subr.mxu0 0.0
    %353 = vmatpush1.msra.mxu0 0.0
    %354 = vmatprep.subr.mxu0 0.0
    %355 = vmatpush1.msra.mxu0 0.0
    %356 = vmatprep.subr.mxu0 0.0
    %357 = vmatpush1.msra.mxu0 0.0
    %358 = vmatprep.subr.mxu0 0.0
    %359 = vmatpush1.msra.mxu0 0.0
    %360 = vmatprep.subr.mxu0 0.0
    %361 = vmatpush1.msra.mxu0 0.0
    %362 = vmatprep.subr.mxu0 0.0
    %363 = vmatpush1.msra.mxu0 0.0
    %364 = vmatprep.subr.mxu0 0.0
    %365 = vmatpush1.msra.mxu0 0.0
    %366 = vmatprep.subr.mxu0 0.0
    %367 = vmatpush1.msra.mxu0 0.0
    %368 = vmatprep.subr.mxu0 0.0
    %369 = vmatpush1.msra.mxu0 0.0
    %370 = vmatprep.subr.mxu0 0.0
    %371 = vmatpush1.msra.mxu0 0.0
    %372 = vmatprep.subr.mxu0 0.0
    %373 = vmatpush1.msra.mxu0 0.0
    %374 = vmatprep.subr.mxu0 0.0
    %375 = vmatpush1.msra.mxu0 0.0
    %376 = vmatprep.subr.mxu0 0.0
    %377 = vmatpush1.msra.mxu0 0.0
    %378 = vmatprep.subr.mxu0 0.0
    %379 = vmatpush1.msra.mxu0 0.0
    %380 = vmatprep.mubr.f32.mxu0 0.0
    %381 = vmatmul.mubr.f32.gmra.mrb[0].mxu0 %v311
    %v382 = vpop.f32.mrb[0].mxu0
    %v383 = vadd.f32 0.0, %v382
    %v384 = vpop.f32.mrb[0].mxu0
    %385 = vmatprep.mubr.f32.mxu0 0.0
    %386 = vmatmul.mubr.f32.gmra.mrb[0].mxu0 %v314
    %v387 = vpop.f32.mrb[0].mxu0
    %v388 = vadd.f32 0.0, %v387
    %v389 = vpop.f32.mrb[0].mxu0
    %390 = vdwg.mxu0
    %393 = vrot.lane.b32.xlu0 %v383, 64
    %v394 = vpop.permute.xlu0 %393
    %395 = vrot.lane.b32.xlu0 %v388, 64
    %v396 = vpop.permute.xlu0 %395
    %v399 = vadd.f32 %v174, %v394
    %v400 = vadd.f32 %v179, %v396
    %v401 = vtanh.pop %v399
    %v402 = vtanh.pop %v400
    %v403 = vsub.f32 1.0, %v301
    %v404 = vsub.f32 1.0, %v303
    %405 = vrot.lane.b32.xlu0 %v92, 32
    %v406 = vpop.permute.xlu0 %405
    %407 = vrot.lane.b32.xlu0 %v93, 32
    %v408 = vpop.permute.xlu0 %407
    %v411 = vmul.f32 %v403, %v406
    %v412 = vmul.f32 %v404, %v408
    %415 = vrot.lane.b32.xlu0 %v401, 96
    %v416 = vpop.permute.xlu0 %415
    %417 = vrot.lane.b32.xlu0 %v402, 96
    %v418 = vpop.permute.xlu0 %417
    %v421 = vmul.f32 %v301, %v416
    %v422 = vmul.f32 %v303, %v418
    %v423 = vadd.f32 %v411, %v421
    %v424 = vadd.f32 %v412, %v422
    %427 = vrot.lane.b32.xlu0 %v423, 96
    %v428 = vpop.permute.xlu0 %427
    %429 = vrot.lane.b32.xlu0 %v424, 96
    %v430 = vpop.permute.xlu0 %429
    %433 = vst.msk [vmem:[#allocation11] sm:$0xff] %vm100, %v428
    %434 = vst.msk [vmem:[#allocation11 + $0x8] sm:$0xff] %vm100, %v430
    // Predicated region
    $region46: #{tpu_custom_call.1} parent=1 // pred_check
      _
    $region47: #{tpu_custom_call.1} parent=1 // pred_check_branch
      %436 = sbr.rel (0) target = $region49
    $region48: #{tpu_custom_call.1} parent=1 // pred_region
      %s438 = ssub.s32 256, 256
      %439 = vsyncadd [#allocation4], %s438
      %s440 = sshll.u32 [#allocation11], 4
      %s441 = int_to_ptr.vmem [resolvable:$true] %s440
      %446 = dma.vmem_to_hbm [thread:$0]  %s441, 256, %s6, [#allocation4], 128, 128, 8
    $region49: #{tpu_custom_call.1} parent=1 // pred_fallthru
      _
    // Predicated region
    $region50: #{tpu_custom_call.1} parent=1 // pred_check
      _
    $region51: #{tpu_custom_call.1} parent=1 // pred_check_branch
      %448 = sbr.rel (0) target = $region53
    $region52: #{tpu_custom_call.1} parent=1 // pred_region
      %449 = dma.done [#allocation4], 256
    $region53: #{tpu_custom_call.1} parent=1 // pred_fallthru
      _
    %450 = vsyncpa [#allocation3], 1
    %451 = vsyncpa [#allocation6], 1
    %452 = vsyncpa [#allocation9], 1
    %453 = vsyncpa [#allocation4], 1

</llo_original>
